<compile_context>
chip_gen: v6e
topology: v6e:2x2x1
jax: 0.10.0
libtpu: 0.0.40
codegen_flags: <defaults>
</compile_context>

<pallas_src>
import functools

import jax
import jax.numpy as jnp
from jax.experimental import pallas as pl
from jax.experimental.pallas import tpu as pltpu

BN_EPS = 1e-5
LANE = 128
SUBLANE_BF16 = 16   # bf16 packs (16, 128) per vreg
TB_MAX = 1024       # batch-tile cap: past the per-step-overhead knee on v6e/v7x,
                    # and the recommended ceiling for v5e


def _round_up(n, m):
    return ((n + m - 1) // m) * m


def _cdiv(a, b):
    return -(-a // b)


def _pad_to(a, shape):
    pads = [(0, s - d) for d, s in zip(a.shape, shape)]
    return jnp.pad(a, pads)


def _batch_tiling(B):
    """Return (TB, B_pad).

    Small batches run as a single tile (one grid step, no per-step overhead).
    Large batches use tiles <= TB_MAX rows with an EVEN number of grid steps so
    the "parallel" batch axis can shard across v7x's two TensorCores.
    """
    b16 = _round_up(max(B, SUBLANE_BF16), SUBLANE_BF16)
    if b16 <= TB_MAX:
        return b16, b16
    steps = 2 * _cdiv(b16, 2 * TB_MAX)          # even step count
    tb = _round_up(_cdiv(b16, steps), SUBLANE_BF16)
    return tb, steps * tb


def _mlp_kernel(
    x_ref,
    w1_ref, b1_ref,
    w2_ref, b2_ref,
    w3_ref, b3_ref,
    w4_ref, b4_ref,
    w5_ref, b5_ref,
    o_ref,
):
    def layer(h, w_r, b_r):
        # Linear (BN already folded in): bf16 operands, f32 MXU accumulation.
        y = jnp.dot(h, w_r[...], preferred_element_type=jnp.float32) + b_r[...]
        # ReLU (dropout is identity in eval mode); back to bf16 for next MXU pass.
        return jnp.maximum(y, 0.0).astype(jnp.bfloat16)

    # Cast x f32 -> bf16 in-kernel (cheap VPU work, hidden under first matmul).
    h = x_ref[...].astype(jnp.bfloat16)
    h = layer(h, w1_ref, b1_ref)
    h = layer(h, w2_ref, b2_ref)
    h = layer(h, w3_ref, b3_ref)
    h = layer(h, w4_ref, b4_ref)
    # Final linear + tanh head (lane-padded to 128); bf16 store halves output DMA.
    y = jnp.dot(h, w5_ref[...], preferred_element_type=jnp.float32) + b5_ref[...]
    o_ref[...] = jnp.tanh(y).astype(jnp.bfloat16)


def prepare_params(params):
    """Fold BN into Linear, pad narrow dims to 128 lanes, cast weights to bf16.

    Returns [w1, b1, ..., w5, b5] with weights bf16 and biases f32 (1, N).
    Runs once (hoisted out of the per-call path).
    """
    p = list(params)
    folded = []
    idx = 0
    for _ in range(4):
        w, b, g, be, m, v = p[idx:idx + 6]
        idx += 6
        scale = g * jax.lax.rsqrt(v + BN_EPS)         # (1, out), f32
        w_f = w * scale                                # fold in f32, cast at the end
        b_f = (b - m) * scale + be
        folded.append((w_f, b_f))
    w5, b5 = p[idx:idx + 2]
    folded.append((w5, b5))

    # Pad layer-4 output (64 -> 128) and the head (64x8 -> 128x128) so every
    # store is a full 128-lane vreg (no masked vst). Padded columns/rows are
    # exact zeros -> padded outputs are tanh(0) = 0 and get sliced off.
    w4, b4 = folded[3]
    out4 = _round_up(w4.shape[1], LANE)
    folded[3] = (_pad_to(w4, (w4.shape[0], out4)), _pad_to(b4, (1, out4)))
    w5, b5 = folded[4]
    out5 = _round_up(w5.shape[1], LANE)
    folded[4] = (_pad_to(w5, (out4, out5)), _pad_to(b5, (1, out5)))

    prepped = []
    for w, b in folded:
        prepped.append(w.astype(jnp.bfloat16))
        prepped.append(b.astype(jnp.float32))
    return tuple(prepped)


def _forward_impl(x, prepped, out_features):
    B, in_dim = x.shape
    out_pad = prepped[-1].shape[-1]               # 128 (lane-padded head width)

    TB, B_pad = _batch_tiling(B)
    x_p = jnp.pad(x, ((0, B_pad - B), (0, 0)))    # stays f32; cast happens in-kernel

    def const_spec(a):
        # Constant index_map -> block stays VMEM-resident across grid steps.
        return pl.BlockSpec(a.shape, lambda i: (0, 0))

    in_specs = [pl.BlockSpec((TB, in_dim), lambda i: (i, 0))]
    in_specs += [const_spec(a) for a in prepped]
    out_specs = pl.BlockSpec((TB, out_pad), lambda i: (i, 0))

    layer_dims = [(w.shape[0], w.shape[1]) for w in prepped[0::2]]
    flops = 2 * B_pad * sum(k * n for k, n in layer_dims)
    bytes_accessed = (
        x_p.size * x_p.dtype.itemsize
        + sum(a.size * a.dtype.itemsize for a in prepped)
        + B_pad * out_pad * 2                      # bf16 output
    )
    cost = pl.CostEstimate(
        flops=flops,
        transcendentals=B_pad * out_pad,           # tanh
        bytes_accessed=bytes_accessed,
    )

    out = pl.pallas_call(
        _mlp_kernel,
        out_shape=jax.ShapeDtypeStruct((B_pad, out_pad), jnp.bfloat16),
        grid=(B_pad // TB,),
        in_specs=in_specs,
        out_specs=out_specs,
        compiler_params=pltpu.CompilerParams(
            dimension_semantics=("parallel",)),
        cost_estimate=cost,
    )(x_p, *prepped)

    return out[:B, :out_features].astype(jnp.float32)


def make_racing_forward(params):
    """Fold/pad/cast params once; return a jitted forward(x) -> (B, out) f32."""
    out_features = int(params[-1].shape[-1])
    prepped = prepare_params(params)

    @jax.jit
    def forward(x, prepped):
        return _forward_impl(x, prepped, out_features)

    return functools.partial(forward, prepped=prepped)


def init_params(key, input_size, output_size):
    """Deterministic synthetic parameters matching RacingModel.__init__ shapes."""
    dims = [input_size, 512, 256, 128, 64, output_size]
    params = []
    keys = jax.random.split(key, 32)
    ki = 0
    for li in range(5):
        fan_in, fan_out = dims[li], dims[li + 1]
        # Linear weight stored pre-transposed: (in, out). PyTorch stores (out, in).
        w = jax.random.normal(keys[ki], (fan_in, fan_out), jnp.float32) * (1.0 / jnp.sqrt(fan_in)); ki += 1
        b = jax.random.normal(keys[ki], (1, fan_out), jnp.float32) * 0.1; ki += 1
        params.extend([w, b])
        if li < 4:
            # BatchNorm1d params: gamma, beta, running_mean, running_var
            gamma = 1.0 + 0.1 * jax.random.normal(keys[ki], (1, fan_out), jnp.float32); ki += 1
            beta = 0.1 * jax.random.normal(keys[ki], (1, fan_out), jnp.float32); ki += 1
            rmean = 0.1 * jax.random.normal(keys[ki], (1, fan_out), jnp.float32); ki += 1
            rvar = 1.0 + 0.1 * jax.random.uniform(keys[ki], (1, fan_out), jnp.float32); ki += 1
            params.extend([gamma, beta, rmean, rvar])
    return tuple(params)


def reference_forward(x, params):
    """Pure-JAX f32 reference (eval-mode module semantics)."""
    p = list(params)
    h = x
    idx = 0
    for _ in range(4):
        w, b, g, be, m, v = p[idx:idx + 6]; idx += 6
        y = h @ w + b
        y = (y - m) * jax.lax.rsqrt(v + BN_EPS) * g + be
        h = jnp.maximum(y, 0.0)
    w, b = p[idx:idx + 2]
    return jnp.tanh(h @ w + b)


if __name__ == "__main__":
    key = jax.random.PRNGKey(0)
    k_x, k_p = jax.random.split(key)

    batch = 8
    input_size = 32
    output_size = 8

    x = jax.random.normal(k_x, (batch, input_size), jnp.float32)
    params = init_params(k_p, input_size, output_size)

    forward = make_racing_forward(params)      # param prep hoisted, forward jitted
    out = jax.block_until_ready(forward(x))

    ref = reference_forward(x, params)
    assert out.shape == (batch, output_size)
    # Kernel uses bf16 MXU operands (f32 accumulation) and a bf16 head store;
    # compare against the f32 reference with a bf16-appropriate tolerance.
    assert jnp.allclose(out, ref, atol=5e-2, rtol=5e-2), "mismatch vs reference"

    print("KERNEL_OK")
</pallas_src>

<mosaic_0001>
module attributes {stable_mosaic.version = 11 : i64} {
  func.func @_mlp_kernel(%arg0: i32, %arg1: memref<16x32xf32, #tpu.memory_space<vmem>>, %arg2: memref<32x512xbf16, #tpu.memory_space<vmem>>, %arg3: memref<1x512xf32, #tpu.memory_space<vmem>>, %arg4: memref<512x256xbf16, #tpu.memory_space<vmem>>, %arg5: memref<1x256xf32, #tpu.memory_space<vmem>>, %arg6: memref<256x128xbf16, #tpu.memory_space<vmem>>, %arg7: memref<1x128xf32, #tpu.memory_space<vmem>>, %arg8: memref<128x128xbf16, #tpu.memory_space<vmem>>, %arg9: memref<1x128xf32, #tpu.memory_space<vmem>>, %arg10: memref<128x128xbf16, #tpu.memory_space<vmem>>, %arg11: memref<1x128xf32, #tpu.memory_space<vmem>>, %arg12: memref<16x128xbf16, #tpu.memory_space<vmem>>) attributes {dimension_semantics = [#tpu.dimension_semantics<parallel>], iteration_bounds = array<i64: 1>, scalar_prefetch = 0 : i64, scratch_operands = 0 : i64, tpu.core_type = #tpu.core_type<tc>, window_params = [{transform_indices = @transform_0, window_bounds = array<i64: 16, 32>}, {pipeline_mode = #tpu.pipeline_mode<synchronous>, transform_indices = @transform_1, window_bounds = array<i64: 32, 512>}, {pipeline_mode = #tpu.pipeline_mode<synchronous>, transform_indices = @transform_2, window_bounds = array<i64: 1, 512>}, {pipeline_mode = #tpu.pipeline_mode<synchronous>, transform_indices = @transform_3, window_bounds = array<i64: 512, 256>}, {pipeline_mode = #tpu.pipeline_mode<synchronous>, transform_indices = @transform_4, window_bounds = array<i64: 1, 256>}, {pipeline_mode = #tpu.pipeline_mode<synchronous>, transform_indices = @transform_5, window_bounds = array<i64: 256, 128>}, {pipeline_mode = #tpu.pipeline_mode<synchronous>, transform_indices = @transform_6, window_bounds = array<i64: 1, 128>}, {pipeline_mode = #tpu.pipeline_mode<synchronous>, transform_indices = @transform_7, window_bounds = array<i64: 128, 128>}, {pipeline_mode = #tpu.pipeline_mode<synchronous>, transform_indices = @transform_8, window_bounds = array<i64: 1, 128>}, {pipeline_mode = #tpu.pipeline_mode<synchronous>, transform_indices = @transform_9, window_bounds = array<i64: 128, 128>}, {pipeline_mode = #tpu.pipeline_mode<synchronous>, transform_indices = @transform_10, window_bounds = array<i64: 1, 128>}, {transform_indices = @transform_11, window_bounds = array<i64: 16, 128>}]} {
    %c0 = arith.constant 0 : index
    %c0_0 = arith.constant 0 : index
    %0 = vector.load %arg1[%c0, %c0_0] : memref<16x32xf32, #tpu.memory_space<vmem>>, vector<16x32xf32>
    %1 = arith.truncf %0 : vector<16x32xf32> to vector<16x32xbf16>
    %c0_1 = arith.constant 0 : index
    %c0_2 = arith.constant 0 : index
    %2 = vector.load %arg2[%c0_1, %c0_2] : memref<32x512xbf16, #tpu.memory_space<vmem>>, vector<32x512xbf16>
    %cst = arith.constant dense<0.000000e+00> : vector<16x512xf32>
    %3 = tpu.matmul %1, %2, %cst {dimension_numbers = #tpu.dot_dimension_numbers<[1], [0], [0], [1], [0, 0, 1, 1], [], []>} : vector<16x32xbf16>, vector<32x512xbf16>, vector<16x512xf32> -> vector<16x512xf32>
    %c0_3 = arith.constant 0 : index
    %c0_4 = arith.constant 0 : index
    %4 = vector.load %arg3[%c0_3, %c0_4] : memref<1x512xf32, #tpu.memory_space<vmem>>, vector<1x512xf32>
    %5 = vector.broadcast %4 : vector<1x512xf32> to vector<16x512xf32>
    %6 = arith.addf %3, %5 : vector<16x512xf32>
    %cst_5 = arith.constant 0.000000e+00 : f32
    %7 = vector.broadcast %cst_5 : f32 to vector<16x512xf32>
    %8 = arith.maximumf %6, %7 : vector<16x512xf32>
    %9 = arith.truncf %8 : vector<16x512xf32> to vector<16x512xbf16>
    %c0_6 = arith.constant 0 : index
    %c0_7 = arith.constant 0 : index
    %10 = vector.load %arg4[%c0_6, %c0_7] : memref<512x256xbf16, #tpu.memory_space<vmem>>, vector<512x256xbf16>
    %cst_8 = arith.constant dense<0.000000e+00> : vector<16x256xf32>
    %11 = tpu.matmul %9, %10, %cst_8 {dimension_numbers = #tpu.dot_dimension_numbers<[1], [0], [0], [1], [0, 0, 1, 1], [], []>} : vector<16x512xbf16>, vector<512x256xbf16>, vector<16x256xf32> -> vector<16x256xf32>
    %c0_9 = arith.constant 0 : index
    %c0_10 = arith.constant 0 : index
    %12 = vector.load %arg5[%c0_9, %c0_10] : memref<1x256xf32, #tpu.memory_space<vmem>>, vector<1x256xf32>
    %13 = vector.broadcast %12 : vector<1x256xf32> to vector<16x256xf32>
    %14 = arith.addf %11, %13 : vector<16x256xf32>
    %cst_11 = arith.constant 0.000000e+00 : f32
    %15 = vector.broadcast %cst_11 : f32 to vector<16x256xf32>
    %16 = arith.maximumf %14, %15 : vector<16x256xf32>
    %17 = arith.truncf %16 : vector<16x256xf32> to vector<16x256xbf16>
    %c0_12 = arith.constant 0 : index
    %c0_13 = arith.constant 0 : index
    %18 = vector.load %arg6[%c0_12, %c0_13] : memref<256x128xbf16, #tpu.memory_space<vmem>>, vector<256x128xbf16>
    %cst_14 = arith.constant dense<0.000000e+00> : vector<16x128xf32>
    %19 = tpu.matmul %17, %18, %cst_14 {dimension_numbers = #tpu.dot_dimension_numbers<[1], [0], [0], [1], [0, 0, 1, 1], [], []>} : vector<16x256xbf16>, vector<256x128xbf16>, vector<16x128xf32> -> vector<16x128xf32>
    %c0_15 = arith.constant 0 : index
    %c0_16 = arith.constant 0 : index
    %20 = vector.load %arg7[%c0_15, %c0_16] : memref<1x128xf32, #tpu.memory_space<vmem>>, vector<1x128xf32>
    %21 = vector.broadcast %20 : vector<1x128xf32> to vector<16x128xf32>
    %22 = arith.addf %19, %21 : vector<16x128xf32>
    %cst_17 = arith.constant 0.000000e+00 : f32
    %23 = vector.broadcast %cst_17 : f32 to vector<16x128xf32>
    %24 = arith.maximumf %22, %23 : vector<16x128xf32>
    %25 = arith.truncf %24 : vector<16x128xf32> to vector<16x128xbf16>
    %c0_18 = arith.constant 0 : index
    %c0_19 = arith.constant 0 : index
    %26 = vector.load %arg8[%c0_18, %c0_19] : memref<128x128xbf16, #tpu.memory_space<vmem>>, vector<128x128xbf16>
    %cst_20 = arith.constant dense<0.000000e+00> : vector<16x128xf32>
    %27 = tpu.matmul %25, %26, %cst_20 {dimension_numbers = #tpu.dot_dimension_numbers<[1], [0], [0], [1], [0, 0, 1, 1], [], []>} : vector<16x128xbf16>, vector<128x128xbf16>, vector<16x128xf32> -> vector<16x128xf32>
    %c0_21 = arith.constant 0 : index
    %c0_22 = arith.constant 0 : index
    %28 = vector.load %arg9[%c0_21, %c0_22] : memref<1x128xf32, #tpu.memory_space<vmem>>, vector<1x128xf32>
    %29 = vector.broadcast %28 : vector<1x128xf32> to vector<16x128xf32>
    %30 = arith.addf %27, %29 : vector<16x128xf32>
    %cst_23 = arith.constant 0.000000e+00 : f32
    %31 = vector.broadcast %cst_23 : f32 to vector<16x128xf32>
    %32 = arith.maximumf %30, %31 : vector<16x128xf32>
    %33 = arith.truncf %32 : vector<16x128xf32> to vector<16x128xbf16>
    %c0_24 = arith.constant 0 : index
    %c0_25 = arith.constant 0 : index
    %34 = vector.load %arg10[%c0_24, %c0_25] : memref<128x128xbf16, #tpu.memory_space<vmem>>, vector<128x128xbf16>
    %cst_26 = arith.constant dense<0.000000e+00> : vector<16x128xf32>
    %35 = tpu.matmul %33, %34, %cst_26 {dimension_numbers = #tpu.dot_dimension_numbers<[1], [0], [0], [1], [0, 0, 1, 1], [], []>} : vector<16x128xbf16>, vector<128x128xbf16>, vector<16x128xf32> -> vector<16x128xf32>
    %c0_27 = arith.constant 0 : index
    %c0_28 = arith.constant 0 : index
    %36 = vector.load %arg11[%c0_27, %c0_28] : memref<1x128xf32, #tpu.memory_space<vmem>>, vector<1x128xf32>
    %37 = vector.broadcast %36 : vector<1x128xf32> to vector<16x128xf32>
    %38 = arith.addf %35, %37 : vector<16x128xf32>
    %39 = math.tanh %38 : vector<16x128xf32>
    %40 = arith.truncf %39 : vector<16x128xf32> to vector<16x128xbf16>
    %c0_29 = arith.constant 0 : index
    %c0_30 = arith.constant 0 : index
    %41 = vector.load %arg12[%c0_29, %c0_30] : memref<16x128xbf16, #tpu.memory_space<vmem>>, vector<16x128xbf16>
    tpu.vector_store %arg12[%c0_29, %c0_30], %40 {strides = array<i32>} : memref<16x128xbf16, #tpu.memory_space<vmem>>, vector<16x128xbf16>,
    return
  }
  func.func @transform_0(%arg0: i32) -> (i32, i32) {
    %c0_i32 = arith.constant 0 : i32
    %c0_i32_0 = arith.constant 0 : i32
    return %arg0, %c0_i32 : i32, i32
  }
  func.func @transform_1(%arg0: i32) -> (i32, i32) {
    %c0_i32 = arith.constant 0 : i32
    %c0_i32_0 = arith.constant 0 : i32
    %c0_i32_1 = arith.constant 0 : i32
    return %c0_i32, %c0_i32_0 : i32, i32
  }
  func.func @transform_2(%arg0: i32) -> (i32, i32) {
    %c0_i32 = arith.constant 0 : i32
    %c0_i32_0 = arith.constant 0 : i32
    %c0_i32_1 = arith.constant 0 : i32
    return %c0_i32, %c0_i32_0 : i32, i32
  }
  func.func @transform_3(%arg0: i32) -> (i32, i32) {
    %c0_i32 = arith.constant 0 : i32
    %c0_i32_0 = arith.constant 0 : i32
    %c0_i32_1 = arith.constant 0 : i32
    return %c0_i32, %c0_i32_0 : i32, i32
  }
  func.func @transform_4(%arg0: i32) -> (i32, i32) {
    %c0_i32 = arith.constant 0 : i32
    %c0_i32_0 = arith.constant 0 : i32
    %c0_i32_1 = arith.constant 0 : i32
    return %c0_i32, %c0_i32_0 : i32, i32
  }
  func.func @transform_5(%arg0: i32) -> (i32, i32) {
    %c0_i32 = arith.constant 0 : i32
    %c0_i32_0 = arith.constant 0 : i32
    %c0_i32_1 = arith.constant 0 : i32
    return %c0_i32, %c0_i32_0 : i32, i32
  }
  func.func @transform_6(%arg0: i32) -> (i32, i32) {
    %c0_i32 = arith.constant 0 : i32
    %c0_i32_0 = arith.constant 0 : i32
    %c0_i32_1 = arith.constant 0 : i32
    return %c0_i32, %c0_i32_0 : i32, i32
  }
  func.func @transform_7(%arg0: i32) -> (i32, i32) {
    %c0_i32 = arith.constant 0 : i32
    %c0_i32_0 = arith.constant 0 : i32
    %c0_i32_1 = arith.constant 0 : i32
    return %c0_i32, %c0_i32_0 : i32, i32
  }
  func.func @transform_8(%arg0: i32) -> (i32, i32) {
    %c0_i32 = arith.constant 0 : i32
    %c0_i32_0 = arith.constant 0 : i32
    %c0_i32_1 = arith.constant 0 : i32
    return %c0_i32, %c0_i32_0 : i32, i32
  }
  func.func @transform_9(%arg0: i32) -> (i32, i32) {
    %c0_i32 = arith.constant 0 : i32
    %c0_i32_0 = arith.constant 0 : i32
    %c0_i32_1 = arith.constant 0 : i32
    return %c0_i32, %c0_i32_0 : i32, i32
  }
  func.func @transform_10(%arg0: i32) -> (i32, i32) {
    %c0_i32 = arith.constant 0 : i32
    %c0_i32_0 = arith.constant 0 : i32
    %c0_i32_1 = arith.constant 0 : i32
    return %c0_i32, %c0_i32_0 : i32, i32
  }
  func.func @transform_11(%arg0: i32) -> (i32, i32) {
    %c0_i32 = arith.constant 0 : i32
    %c0_i32_0 = arith.constant 0 : i32
    return %arg0, %c0_i32 : i32, i32
  }
}

</mosaic_0001>

<llo_original>
// kernel: forward.1
$region0: #{forward.1}
  #allocation0 [shape = 'u32[]', space=smem, size = 0x4, offset = 0x4, fixed_abs, tag = 'smem constant byte address 0x4 - core index']
  #allocation1 [shape = 'u32[144,128]{1,0:T(1,128)}', space=vmem, size = 0x12000, scoped, tag = 'internal scratch']
  %s0 = inlined_call_operand.vmem [shape: f32[16,32], index: 0, kind: input, shape index: {}]
  %s1 = inlined_call_operand.hbm [shape: bf16[32,512], index: 1, kind: input, shape index: {}]
  %s2 = inlined_call_operand.vmem [shape: f32[1,512], index: 2, kind: input, shape index: {}]
  %s3 = inlined_call_operand.hbm [shape: bf16[512,256], index: 3, kind: input, shape index: {}]
  %s4 = inlined_call_operand.vmem [shape: f32[1,256], index: 4, kind: input, shape index: {}]
  %s5 = inlined_call_operand.hbm [shape: bf16[256,128], index: 5, kind: input, shape index: {}]
  %s6 = inlined_call_operand.vmem [shape: f32[1,128], index: 6, kind: input, shape index: {}]
  %s7 = inlined_call_operand.hbm [shape: bf16[128,128], index: 7, kind: input, shape index: {}]
  %s8 = inlined_call_operand.vmem [shape: f32[1,128], index: 8, kind: input, shape index: {}]
  %s9 = inlined_call_operand.hbm [shape: bf16[128,128], index: 9, kind: input, shape index: {}]
  %s10 = inlined_call_operand.vmem [shape: f32[1,128], index: 10, kind: input, shape index: {}]
  %s11 = inlined_call_operand.vmem [shape: bf16[16,128], index: 11, kind: output, shape index: {}]
  %s12 = sld [smem:[#allocation0]]
  $region74: #{forward.1} parent=0
    _
  %s14 = ssub.s32 1, %s12
  %s15 = scalar_select 0, %s14, %s12
  $region1: #{forward.1} parent=0
    #allocation2 [shape = 'u8[32768]{0}', space=vmem, size = 0x8000, scoped, tag = 'input window, operand 1, single buffered']
    #allocation3 [shape = 's32[1]{0}', space=sflag, size = 0x4, scoped, tag = 'scoped memory for forward.1']
    #allocation4 [shape = 'u8[262144]{0}', space=vmem, size = 0x40000, scoped, tag = 'input window, operand 3, single buffered']
    #allocation5 [shape = 's32[1]{0}', space=sflag, size = 0x4, scoped, tag = 'scoped memory for forward.1']
    #allocation6 [shape = 'u8[65536]{0}', space=vmem, size = 0x10000, scoped, tag = 'input window, operand 5, single buffered']
    #allocation7 [shape = 'u8[32768]{0}', space=vmem, size = 0x8000, scoped, tag = 'input window, operand 7, single buffered']
    #allocation8 [shape = 's32[1]{0}', space=sflag, size = 0x4, scoped, tag = 'scoped memory for forward.1']
    #allocation9 [shape = 'u8[32768]{0}', space=vmem, size = 0x8000, scoped, tag = 'input window, operand 9, single buffered']
    %16 = vsyncpa [#allocation3], 0
    %17 = vsyncpa [#allocation5], 0
    %18 = vsyncpa [#allocation8], 0
    // Predicated region
    $region2: #{forward.1} parent=1 // pred_check
      _
    $region3: #{forward.1} parent=1 // pred_check_branch
      %20 = sbr.rel (0) target = $region5
    $region4: #{forward.1} parent=1 // pred_region
      _
    $region5: #{forward.1} parent=1 // pred_fallthru
      _
    // Predicated region
    $region6: #{forward.1} parent=1 // pred_check
      _
    $region7: #{forward.1} parent=1 // pred_check_branch
      %22 = sbr.rel (0) target = $region9
    $region8: #{forward.1} parent=1 // pred_region
      %s24 = ssub.s32 1024, 1024
      %25 = vsyncadd [#allocation3], %s24
      %s26 = sshll.u32 [#allocation2], 4
      %s27 = int_to_ptr.vmem [resolvable:$true] %s26
      %32 = dma.hbm_to_vmem [thread:$0]  %s1, 1024, %s27, [#allocation3], 256, 256, 16
    $region9: #{forward.1} parent=1 // pred_fallthru
      _
    // Predicated region
    $region10: #{forward.1} parent=1 // pred_check
      _
    $region11: #{forward.1} parent=1 // pred_check_branch
      %34 = sbr.rel (0) target = $region13
    $region12: #{forward.1} parent=1 // pred_region
      _
    $region13: #{forward.1} parent=1 // pred_fallthru
      _
    // Predicated region
    $region14: #{forward.1} parent=1 // pred_check
      _
    $region15: #{forward.1} parent=1 // pred_check_branch
      %36 = sbr.rel (0) target = $region17
    $region16: #{forward.1} parent=1 // pred_region
      %s38 = ssub.s32 8192, 8192
      %39 = vsyncadd [#allocation5], %s38
      %s40 = sshll.u32 [#allocation4], 4
      %s41 = int_to_ptr.vmem [resolvable:$true] %s40
      %46 = dma.hbm_to_vmem [thread:$0]  %s3, 8192, %s41, [#allocation5], 128, 128, 8
    $region17: #{forward.1} parent=1 // pred_fallthru
      _
    // Predicated region
    $region18: #{forward.1} parent=1 // pred_check
      _
    $region19: #{forward.1} parent=1 // pred_check_branch
      %48 = sbr.rel (0) target = $region21
    $region20: #{forward.1} parent=1 // pred_region
      _
    $region21: #{forward.1} parent=1 // pred_fallthru
      _
    // Predicated region
    $region22: #{forward.1} parent=1 // pred_check
      _
    $region23: #{forward.1} parent=1 // pred_check_branch
      %50 = sbr.rel (0) target = $region25
    $region24: #{forward.1} parent=1 // pred_region
      %s52 = ssub.s32 2048, 2048
      %53 = vsyncadd [#allocation5], %s52
      %s54 = sshll.u32 [#allocation6], 4
      %s55 = int_to_ptr.vmem [resolvable:$true] %s54
      %60 = dma.hbm_to_vmem [thread:$0]  %s5, 2048, %s55, [#allocation5], 64, 64, 4
    $region25: #{forward.1} parent=1 // pred_fallthru
      _
    // Predicated region
    $region26: #{forward.1} parent=1 // pred_check
      _
    $region27: #{forward.1} parent=1 // pred_check_branch
      %62 = sbr.rel (0) target = $region29
    $region28: #{forward.1} parent=1 // pred_region
      _
    $region29: #{forward.1} parent=1 // pred_fallthru
      _
    // Predicated region
    $region30: #{forward.1} parent=1 // pred_check
      _
    $region31: #{forward.1} parent=1 // pred_check_branch
      %64 = sbr.rel (0) target = $region33
    $region32: #{forward.1} parent=1 // pred_region
      %s66 = ssub.s32 1024, 1024
      %67 = vsyncadd [#allocation8], %s66
      %s68 = sshll.u32 [#allocation7], 4
      %s69 = int_to_ptr.vmem [resolvable:$true] %s68
      %74 = dma.hbm_to_vmem [thread:$0]  %s7, 1024, %s69, [#allocation8], 64, 64, 4
    $region33: #{forward.1} parent=1 // pred_fallthru
      _
    // Predicated region
    $region34: #{forward.1} parent=1 // pred_check
      _
    $region35: #{forward.1} parent=1 // pred_check_branch
      %76 = sbr.rel (0) target = $region37
    $region36: #{forward.1} parent=1 // pred_region
      _
    $region37: #{forward.1} parent=1 // pred_fallthru
      _
    // Predicated region
    $region38: #{forward.1} parent=1 // pred_check
      _
    $region39: #{forward.1} parent=1 // pred_check_branch
      %78 = sbr.rel (0) target = $region41
    $region40: #{forward.1} parent=1 // pred_region
      %s80 = ssub.s32 1024, 1024
      %81 = vsyncadd [#allocation8], %s80
      %s82 = sshll.u32 [#allocation9], 4
      %s83 = int_to_ptr.vmem [resolvable:$true] %s82
      %88 = dma.hbm_to_vmem [thread:$0]  %s9, 1024, %s83, [#allocation8], 64, 64, 4
    $region41: #{forward.1} parent=1 // pred_fallthru
      _
    // Predicated region
    $region42: #{forward.1} parent=1 // pred_check
      _
    $region43: #{forward.1} parent=1 // pred_check_branch
      %90 = sbr.rel (0) target = $region45
    $region44: #{forward.1} parent=1 // pred_region
      _
    $region45: #{forward.1} parent=1 // pred_fallthru
      _
    // Predicated region
    $region46: #{forward.1} parent=1 // pred_check
      _
    $region47: #{forward.1} parent=1 // pred_check_branch
      %92 = sbr.rel (0) target = $region49
    $region48: #{forward.1} parent=1 // pred_region
      %93 = dma.done [#allocation3], 1024
    $region49: #{forward.1} parent=1 // pred_fallthru
      _
    // Predicated region
    $region50: #{forward.1} parent=1 // pred_check
      _
    $region51: #{forward.1} parent=1 // pred_check_branch
      %95 = sbr.rel (0) target = $region53
    $region52: #{forward.1} parent=1 // pred_region
      %96 = dma.done [#allocation5], 8192
    $region53: #{forward.1} parent=1 // pred_fallthru
      _
    // Predicated region
    $region54: #{forward.1} parent=1 // pred_check
      _
    $region55: #{forward.1} parent=1 // pred_check_branch
      %98 = sbr.rel (0) target = $region57
    $region56: #{forward.1} parent=1 // pred_region
      %99 = dma.done [#allocation5], 2048
    $region57: #{forward.1} parent=1 // pred_fallthru
      _
    // Predicated region
    $region58: #{forward.1} parent=1 // pred_check
      _
    $region59: #{forward.1} parent=1 // pred_check_branch
      %101 = sbr.rel (0) target = $region61
    $region60: #{forward.1} parent=1 // pred_region
      %102 = dma.done [#allocation8], 1024
    $region61: #{forward.1} parent=1 // pred_fallthru
      _
    // Predicated region
    $region62: #{forward.1} parent=1 // pred_check
      _
    $region63: #{forward.1} parent=1 // pred_check_branch
      %104 = sbr.rel (0) target = $region65
    $region64: #{forward.1} parent=1 // pred_region
      %105 = dma.done [#allocation8], 1024
    $region65: #{forward.1} parent=1 // pred_fallthru
      _
    %v107 = vld [vmem:[%s0] sm:$0xff]
    %v108 = vld [vmem:[%s0 + $0x8] sm:$0xff]
    %v109 = vpack.c.bf16 %v108, %v107
    %v110 = vld [vmem:[#allocation2] sm:$0xff]
    %v111 = vld [vmem:[#allocation2 + $0x8] sm:$0xff]
    %v112 = vld [vmem:[#allocation2 + $0x10] sm:$0xff]
    %v113 = vld [vmem:[#allocation2 + $0x18] sm:$0xff]
    %v114 = vld [vmem:[#allocation2 + $0x20] sm:$0xff]
    %v115 = vld [vmem:[#allocation2 + $0x28] sm:$0xff]
    %v116 = vld [vmem:[#allocation2 + $0x30] sm:$0xff]
    %v117 = vld [vmem:[#allocation2 + $0x38] sm:$0xff]
    %v118 = vld [vmem:[%s2] sm:$0xf]
    %v120 = vlaneseq
    %v121 = vshrl.u32 %v120, 7
    %v122 = vsub.s32 0, %v121
    %v123 = vrot.slane %v118, %v122
    %v124 = vlaneseq
    %v125 = vshrl.u32 %v124, 7
    %v126 = vsub.s32 1, %v125
    %v127 = vrot.slane %v118, %v126
    %v128 = vlaneseq
    %v129 = vshrl.u32 %v128, 7
    %v130 = vsub.s32 2, %v129
    %v131 = vrot.slane %v118, %v130
    %v132 = vlaneseq
    %v133 = vshrl.u32 %v132, 7
    %v134 = vsub.s32 3, %v133
    %v135 = vrot.slane %v118, %v134
    %v148 = vunpack.c.l.b16 %v110
    %v149 = vunpack.c.h.b16 %v110
    %v150 = vunpack.c.l.b16 %v111
    %v151 = vunpack.c.h.b16 %v111
    %v152 = vunpack.c.l.b16 %v112
    %v153 = vunpack.c.h.b16 %v112
    %v154 = vunpack.c.l.b16 %v113
    %v155 = vunpack.c.h.b16 %v113
    %v156 = vunpack.c.l.b16 %v114
    %v157 = vunpack.c.h.b16 %v114
    %v158 = vunpack.c.l.b16 %v115
    %v159 = vunpack.c.h.b16 %v115
    %v160 = vunpack.c.l.b16 %v116
    %v161 = vunpack.c.h.b16 %v116
    %v162 = vunpack.c.l.b16 %v117
    %v163 = vunpack.c.h.b16 %v117
    %v164 = vpack.c.b16 %v152, %v148
    %v165 = vpack.c.b16 %v153, %v149
    %v166 = vpack.c.b16 %v154, %v150
    %v167 = vpack.c.b16 %v155, %v151
    %v168 = vpack.c.b16 %v160, %v156
    %v169 = vpack.c.b16 %v161, %v157
    %v170 = vpack.c.b16 %v162, %v158
    %v171 = vpack.c.b16 %v163, %v159
    %vm180 = vcmask 261120
    %v182 = vsel %vm180, %v109, 0
    %184 = vmatprep.subr.bf16.mxu0 0
    %185 = vmatpush1.bf16.msra.mxu0 0
    %186 = vmatprep.subr.bf16.mxu0 0
    %187 = vmatpush1.bf16.msra.mxu0 0
    %188 = vmatprep.subr.bf16.mxu0 0
    %189 = vmatpush1.bf16.msra.mxu0 0
    %190 = vmatprep.subr.bf16.mxu0 0
    %191 = vmatpush1.bf16.msra.mxu0 0
    %192 = vmatprep.subr.bf16.mxu0 0
    %193 = vmatpush1.bf16.msra.mxu0 0
    %194 = vmatprep.subr.bf16.mxu0 0
    %195 = vmatpush1.bf16.msra.mxu0 0
    %196 = vmatprep.subr.bf16.mxu0 %v169
    %197 = vmatpush1.bf16.msra.mxu0 %v168
    %198 = vmatprep.subr.bf16.mxu0 %v165
    %199 = vmatpush1.bf16.msra.mxu0 %v164
    %200 = vmatprep.subr.bf16.mxu0 0
    %201 = vmatpush2.bf16.msra.mxu0 0
    %202 = vmatprep.subr.bf16.mxu0 0
    %203 = vmatpush2.bf16.msra.mxu0 0
    %204 = vmatprep.subr.bf16.mxu0 0
    %205 = vmatpush2.bf16.msra.mxu0 0
    %206 = vmatprep.subr.bf16.mxu0 0
    %207 = vmatpush2.bf16.msra.mxu0 0
    %208 = vmatprep.subr.bf16.mxu0 0
    %209 = vmatpush2.bf16.msra.mxu0 0
    %210 = vmatprep.subr.bf16.mxu0 0
    %211 = vmatpush2.bf16.msra.mxu0 0
    %212 = vmatprep.subr.bf16.mxu0 0
    %213 = vmatpush2.bf16.msra.mxu0 0
    %214 = vmatprep.subr.bf16.mxu0 0
    %215 = vmatpush2.bf16.msra.mxu0 0
    %216 = vmatprep.mubr.bf16.mxu0 0
    %217 = vmatmul.mubr.bf16.gmra.mxu0 %v182
    %v218 = vpop.f32.mrf.mxu0
    %v219 = vadd.f32 %v123, %v218
    %v220 = vpop.f32.mrf.mxu0
    %v221 = vadd.f32 %v127, %v220
    %v222 = vpop.f32.mrf.mxu0
    %v223 = vadd.f32 %v123, %v222
    %v224 = vpop.f32.mrf.mxu0
    %v225 = vadd.f32 %v127, %v224
    %226 = vdwg.mxu0
    %227 = vmatprep.subr.bf16.mxu0 0
    %228 = vmatpush1.bf16.msra.mxu0 0
    %229 = vmatprep.subr.bf16.mxu0 0
    %230 = vmatpush1.bf16.msra.mxu0 0
    %231 = vmatprep.subr.bf16.mxu0 0
    %232 = vmatpush1.bf16.msra.mxu0 0
    %233 = vmatprep.subr.bf16.mxu0 0
    %234 = vmatpush1.bf16.msra.mxu0 0
    %235 = vmatprep.subr.bf16.mxu0 0
    %236 = vmatpush1.bf16.msra.mxu0 0
    %237 = vmatprep.subr.bf16.mxu0 0
    %238 = vmatpush1.bf16.msra.mxu0 0
    %239 = vmatprep.subr.bf16.mxu0 %v171
    %240 = vmatpush1.bf16.msra.mxu0 %v170
    %241 = vmatprep.subr.bf16.mxu0 %v167
    %242 = vmatpush1.bf16.msra.mxu0 %v166
    %243 = vmatprep.subr.bf16.mxu0 0
    %244 = vmatpush2.bf16.msra.mxu0 0
    %245 = vmatprep.subr.bf16.mxu0 0
    %246 = vmatpush2.bf16.msra.mxu0 0
    %247 = vmatprep.subr.bf16.mxu0 0
    %248 = vmatpush2.bf16.msra.mxu0 0
    %249 = vmatprep.subr.bf16.mxu0 0
    %250 = vmatpush2.bf16.msra.mxu0 0
    %251 = vmatprep.subr.bf16.mxu0 0
    %252 = vmatpush2.bf16.msra.mxu0 0
    %253 = vmatprep.subr.bf16.mxu0 0
    %254 = vmatpush2.bf16.msra.mxu0 0
    %255 = vmatprep.subr.bf16.mxu0 0
    %256 = vmatpush2.bf16.msra.mxu0 0
    %257 = vmatprep.subr.bf16.mxu0 0
    %258 = vmatpush2.bf16.msra.mxu0 0
    %259 = vmatprep.mubr.bf16.mxu0 0
    %260 = vmatmul.mubr.bf16.gmra.mxu0 %v182
    %v261 = vpop.f32.mrf.mxu0
    %v262 = vadd.f32 %v131, %v261
    %v263 = vpop.f32.mrf.mxu0
    %v264 = vadd.f32 %v135, %v263
    %v265 = vpop.f32.mrf.mxu0
    %v266 = vadd.f32 %v131, %v265
    %v267 = vpop.f32.mrf.mxu0
    %v268 = vadd.f32 %v135, %v267
    %269 = vdwg.mxu0
    %v270 = vmax.f32 %v219, 0.0
    %v271 = vmax.f32 %v221, 0.0
    %v272 = vmax.f32 %v262, 0.0
    %v273 = vmax.f32 %v264, 0.0
    %v274 = vmax.f32 %v223, 0.0
    %v275 = vmax.f32 %v225, 0.0
    %v276 = vmax.f32 %v266, 0.0
    %v277 = vmax.f32 %v268, 0.0
    %v278 = vpack.c.bf16 %v274, %v270
    %v279 = vpack.c.bf16 %v275, %v271
    %v280 = vpack.c.bf16 %v276, %v272
    %v281 = vpack.c.bf16 %v277, %v273
    %v282 = vld [vmem:[#allocation4] sm:$0xff]
    %v283 = vld [vmem:[#allocation4 + $0x8] sm:$0xff]
    %v284 = vld [vmem:[#allocation4 + $0x10] sm:$0xff]
    %v285 = vld [vmem:[#allocation4 + $0x18] sm:$0xff]
    %v286 = vld [vmem:[#allocation4 + $0x20] sm:$0xff]
    %v287 = vld [vmem:[#allocation4 + $0x28] sm:$0xff]
    %v288 = vld [vmem:[#allocation4 + $0x30] sm:$0xff]
    %v289 = vld [vmem:[#allocation4 + $0x38] sm:$0xff]
    %v290 = vld [vmem:[#allocation4 + $0x40] sm:$0xff]
    %v291 = vld [vmem:[#allocation4 + $0x48] sm:$0xff]
    %v292 = vld [vmem:[#allocation4 + $0x50] sm:$0xff]
    %v293 = vld [vmem:[#allocation4 + $0x58] sm:$0xff]
    %v294 = vld [vmem:[#allocation4 + $0x60] sm:$0xff]
    %v295 = vld [vmem:[#allocation4 + $0x68] sm:$0xff]
    %v296 = vld [vmem:[#allocation4 + $0x70] sm:$0xff]
    %v297 = vld [vmem:[#allocation4 + $0x78] sm:$0xff]
    %v298 = vld [vmem:[#allocation4 + $0x80] sm:$0xff]
    %v299 = vld [vmem:[#allocation4 + $0x88] sm:$0xff]
    %v300 = vld [vmem:[#allocation4 + $0x90] sm:$0xff]
    %v301 = vld [vmem:[#allocation4 + $0x98] sm:$0xff]
    %v302 = vld [vmem:[#allocation4 + $0xa0] sm:$0xff]
    %v303 = vld [vmem:[#allocation4 + $0xa8] sm:$0xff]
    %v304 = vld [vmem:[#allocation4 + $0xb0] sm:$0xff]
    %v305 = vld [vmem:[#allocation4 + $0xb8] sm:$0xff]
    %v306 = vld [vmem:[#allocation4 + $0xc0] sm:$0xff]
    %v307 = vld [vmem:[#allocation4 + $0xc8] sm:$0xff]
    %v308 = vld [vmem:[#allocation4 + $0xd0] sm:$0xff]
    %v309 = vld [vmem:[#allocation4 + $0xd8] sm:$0xff]
    %v310 = vld [vmem:[#allocation4 + $0xe0] sm:$0xff]
    %v311 = vld [vmem:[#allocation4 + $0xe8] sm:$0xff]
    %v312 = vld [vmem:[#allocation4 + $0xf0] sm:$0xff]
    %v313 = vld [vmem:[#allocation4 + $0xf8] sm:$0xff]
    %v314 = vld [vmem:[#allocation4 + $0x100] sm:$0xff]
    %v315 = vld [vmem:[#allocation4 + $0x108] sm:$0xff]
    %v316 = vld [vmem:[#allocation4 + $0x110] sm:$0xff]
    %v317 = vld [vmem:[#allocation4 + $0x118] sm:$0xff]
    %v318 = vld [vmem:[#allocation4 + $0x120] sm:$0xff]
    %v319 = vld [vmem:[#allocation4 + $0x128] sm:$0xff]
    %v320 = vld [vmem:[#allocation4 + $0x130] sm:$0xff]
    %v321 = vld [vmem:[#allocation4 + $0x138] sm:$0xff]
    %v322 = vld [vmem:[#allocation4 + $0x140] sm:$0xff]
    %v323 = vld [vmem:[#allocation4 + $0x148] sm:$0xff]
    %v324 = vld [vmem:[#allocation4 + $0x150] sm:$0xff]
    %v325 = vld [vmem:[#allocation4 + $0x158] sm:$0xff]
    %v326 = vld [vmem:[#allocation4 + $0x160] sm:$0xff]
    %v327 = vld [vmem:[#allocation4 + $0x168] sm:$0xff]
    %v328 = vld [vmem:[#allocation4 + $0x170] sm:$0xff]
    %v329 = vld [vmem:[#allocation4 + $0x178] sm:$0xff]
    %v330 = vld [vmem:[#allocation4 + $0x180] sm:$0xff]
    %v331 = vld [vmem:[#allocation4 + $0x188] sm:$0xff]
    %v332 = vld [vmem:[#allocation4 + $0x190] sm:$0xff]
    %v333 = vld [vmem:[#allocation4 + $0x198] sm:$0xff]
    %v334 = vld [vmem:[#allocation4 + $0x1a0] sm:$0xff]
    %v335 = vld [vmem:[#allocation4 + $0x1a8] sm:$0xff]
    %v336 = vld [vmem:[#allocation4 + $0x1b0] sm:$0xff]
    %v337 = vld [vmem:[#allocation4 + $0x1b8] sm:$0xff]
    %v338 = vld [vmem:[#allocation4 + $0x1c0] sm:$0xff]
    %v339 = vld [vmem:[#allocation4 + $0x1c8] sm:$0xff]
    %v340 = vld [vmem:[#allocation4 + $0x1d0] sm:$0xff]
    %v341 = vld [vmem:[#allocation4 + $0x1d8] sm:$0xff]
    %v342 = vld [vmem:[#allocation4 + $0x1e0] sm:$0xff]
    %v343 = vld [vmem:[#allocation4 + $0x1e8] sm:$0xff]
    %v344 = vld [vmem:[#allocation4 + $0x1f0] sm:$0xff]
    %v345 = vld [vmem:[#allocation4 + $0x1f8] sm:$0xff]
    %v346 = vld [vmem:[%s4] sm:$0x3]
    %v348 = vlaneseq
    %v349 = vshrl.u32 %v348, 7
    %v350 = vsub.s32 0, %v349
    %v351 = vrot.slane %v346, %v350
    %v352 = vlaneseq
    %v353 = vshrl.u32 %v352, 7
    %v354 = vsub.s32 1, %v353
    %v355 = vrot.slane %v346, %v354
    %v422 = vunpack.c.l.b16 %v282
    %v423 = vunpack.c.h.b16 %v282
    %v424 = vunpack.c.l.b16 %v283
    %v425 = vunpack.c.h.b16 %v283
    %v426 = vunpack.c.l.b16 %v284
    %v427 = vunpack.c.h.b16 %v284
    %v428 = vunpack.c.l.b16 %v285
    %v429 = vunpack.c.h.b16 %v285
    %v430 = vunpack.c.l.b16 %v286
    %v431 = vunpack.c.h.b16 %v286
    %v432 = vunpack.c.l.b16 %v287
    %v433 = vunpack.c.h.b16 %v287
    %v434 = vunpack.c.l.b16 %v288
    %v435 = vunpack.c.h.b16 %v288
    %v436 = vunpack.c.l.b16 %v289
    %v437 = vunpack.c.h.b16 %v289
    %v438 = vunpack.c.l.b16 %v290
    %v439 = vunpack.c.h.b16 %v290
    %v440 = vunpack.c.l.b16 %v291
    %v441 = vunpack.c.h.b16 %v291
    %v442 = vunpack.c.l.b16 %v292
    %v443 = vunpack.c.h.b16 %v292
    %v444 = vunpack.c.l.b16 %v293
    %v445 = vunpack.c.h.b16 %v293
    %v446 = vunpack.c.l.b16 %v294
    %v447 = vunpack.c.h.b16 %v294
    %v448 = vunpack.c.l.b16 %v295
    %v449 = vunpack.c.h.b16 %v295
    %v450 = vunpack.c.l.b16 %v296
    %v451 = vunpack.c.h.b16 %v296
    %v452 = vunpack.c.l.b16 %v297
    %v453 = vunpack.c.h.b16 %v297
    %v454 = vunpack.c.l.b16 %v298
    %v455 = vunpack.c.h.b16 %v298
    %v456 = vunpack.c.l.b16 %v299
    %v457 = vunpack.c.h.b16 %v299
    %v458 = vunpack.c.l.b16 %v300
    %v459 = vunpack.c.h.b16 %v300
    %v460 = vunpack.c.l.b16 %v301
    %v461 = vunpack.c.h.b16 %v301
    %v462 = vunpack.c.l.b16 %v302
    %v463 = vunpack.c.h.b16 %v302
    %v464 = vunpack.c.l.b16 %v303
    %v465 = vunpack.c.h.b16 %v303
    %v466 = vunpack.c.l.b16 %v304
    %v467 = vunpack.c.h.b16 %v304
    %v468 = vunpack.c.l.b16 %v305
    %v469 = vunpack.c.h.b16 %v305
    %v470 = vunpack.c.l.b16 %v306
    %v471 = vunpack.c.h.b16 %v306
    %v472 = vunpack.c.l.b16 %v307
    %v473 = vunpack.c.h.b16 %v307
    %v474 = vunpack.c.l.b16 %v308
    %v475 = vunpack.c.h.b16 %v308
    %v476 = vunpack.c.l.b16 %v309
    %v477 = vunpack.c.h.b16 %v309
    %v478 = vunpack.c.l.b16 %v310
    %v479 = vunpack.c.h.b16 %v310
    %v480 = vunpack.c.l.b16 %v311
    %v481 = vunpack.c.h.b16 %v311
    %v482 = vunpack.c.l.b16 %v312
    %v483 = vunpack.c.h.b16 %v312
    %v484 = vunpack.c.l.b16 %v313
    %v485 = vunpack.c.h.b16 %v313
    %v486 = vunpack.c.l.b16 %v314
    %v487 = vunpack.c.h.b16 %v314
    %v488 = vunpack.c.l.b16 %v315
    %v489 = vunpack.c.h.b16 %v315
    %v490 = vunpack.c.l.b16 %v316
    %v491 = vunpack.c.h.b16 %v316
    %v492 = vunpack.c.l.b16 %v317
    %v493 = vunpack.c.h.b16 %v317
    %v494 = vunpack.c.l.b16 %v318
    %v495 = vunpack.c.h.b16 %v318
    %v496 = vunpack.c.l.b16 %v319
    %v497 = vunpack.c.h.b16 %v319
    %v498 = vunpack.c.l.b16 %v320
    %v499 = vunpack.c.h.b16 %v320
    %v500 = vunpack.c.l.b16 %v321
    %v501 = vunpack.c.h.b16 %v321
    %v502 = vunpack.c.l.b16 %v322
    %v503 = vunpack.c.h.b16 %v322
    %v504 = vunpack.c.l.b16 %v323
    %v505 = vunpack.c.h.b16 %v323
    %v506 = vunpack.c.l.b16 %v324
    %v507 = vunpack.c.h.b16 %v324
    %v508 = vunpack.c.l.b16 %v325
    %v509 = vunpack.c.h.b16 %v325
    %v510 = vunpack.c.l.b16 %v326
    %v511 = vunpack.c.h.b16 %v326
    %v512 = vunpack.c.l.b16 %v327
    %v513 = vunpack.c.h.b16 %v327
    %v514 = vunpack.c.l.b16 %v328
    %v515 = vunpack.c.h.b16 %v328
    %v516 = vunpack.c.l.b16 %v329
    %v517 = vunpack.c.h.b16 %v329
    %v518 = vunpack.c.l.b16 %v330
    %v519 = vunpack.c.h.b16 %v330
    %v520 = vunpack.c.l.b16 %v331
    %v521 = vunpack.c.h.b16 %v331
    %v522 = vunpack.c.l.b16 %v332
    %v523 = vunpack.c.h.b16 %v332
    %v524 = vunpack.c.l.b16 %v333
    %v525 = vunpack.c.h.b16 %v333
    %v526 = vunpack.c.l.b16 %v334
    %v527 = vunpack.c.h.b16 %v334
    %v528 = vunpack.c.l.b16 %v335
    %v529 = vunpack.c.h.b16 %v335
    %v530 = vunpack.c.l.b16 %v336
    %v531 = vunpack.c.h.b16 %v336
    %v532 = vunpack.c.l.b16 %v337
    %v533 = vunpack.c.h.b16 %v337
    %v534 = vunpack.c.l.b16 %v338
    %v535 = vunpack.c.h.b16 %v338
    %v536 = vunpack.c.l.b16 %v339
    %v537 = vunpack.c.h.b16 %v339
    %v538 = vunpack.c.l.b16 %v340
    %v539 = vunpack.c.h.b16 %v340
    %v540 = vunpack.c.l.b16 %v341
    %v541 = vunpack.c.h.b16 %v341
    %v542 = vunpack.c.l.b16 %v342
    %v543 = vunpack.c.h.b16 %v342
    %v544 = vunpack.c.l.b16 %v343
    %v545 = vunpack.c.h.b16 %v343
    %v546 = vunpack.c.l.b16 %v344
    %v547 = vunpack.c.h.b16 %v344
    %v548 = vunpack.c.l.b16 %v345
    %v549 = vunpack.c.h.b16 %v345
    %v550 = vpack.c.b16 %v424, %v422
    %v551 = vpack.c.b16 %v425, %v423
    %v552 = vpack.c.b16 %v428, %v426
    %v553 = vpack.c.b16 %v429, %v427
    %v554 = vpack.c.b16 %v432, %v430
    %v555 = vpack.c.b16 %v433, %v431
    %v556 = vpack.c.b16 %v436, %v434
    %v557 = vpack.c.b16 %v437, %v435
    %v558 = vpack.c.b16 %v440, %v438
    %v559 = vpack.c.b16 %v441, %v439
    %v560 = vpack.c.b16 %v444, %v442
    %v561 = vpack.c.b16 %v445, %v443
    %v562 = vpack.c.b16 %v448, %v446
    %v563 = vpack.c.b16 %v449, %v447
    %v564 = vpack.c.b16 %v452, %v450
    %v565 = vpack.c.b16 %v453, %v451
    %v566 = vpack.c.b16 %v456, %v454
    %v567 = vpack.c.b16 %v457, %v455
    %v568 = vpack.c.b16 %v460, %v458
    %v569 = vpack.c.b16 %v461, %v459
    %v570 = vpack.c.b16 %v464, %v462
    %v571 = vpack.c.b16 %v465, %v463
    %v572 = vpack.c.b16 %v468, %v466
    %v573 = vpack.c.b16 %v469, %v467
    %v574 = vpack.c.b16 %v472, %v470
    %v575 = vpack.c.b16 %v473, %v471
    %v576 = vpack.c.b16 %v476, %v474
    %v577 = vpack.c.b16 %v477, %v475
    %v578 = vpack.c.b16 %v480, %v478
    %v579 = vpack.c.b16 %v481, %v479
    %v580 = vpack.c.b16 %v484, %v482
    %v581 = vpack.c.b16 %v485, %v483
    %v582 = vpack.c.b16 %v488, %v486
    %v583 = vpack.c.b16 %v489, %v487
    %v584 = vpack.c.b16 %v492, %v490
    %v585 = vpack.c.b16 %v493, %v491
    %v586 = vpack.c.b16 %v496, %v494
    %v587 = vpack.c.b16 %v497, %v495
    %v588 = vpack.c.b16 %v500, %v498
    %v589 = vpack.c.b16 %v501, %v499
    %v590 = vpack.c.b16 %v504, %v502
    %v591 = vpack.c.b16 %v505, %v503
    %v592 = vpack.c.b16 %v508, %v506
    %v593 = vpack.c.b16 %v509, %v507
    %v594 = vpack.c.b16 %v512, %v510
    %v595 = vpack.c.b16 %v513, %v511
    %v596 = vpack.c.b16 %v516, %v514
    %v597 = vpack.c.b16 %v517, %v515
    %v598 = vpack.c.b16 %v520, %v518
    %v599 = vpack.c.b16 %v521, %v519
    %v600 = vpack.c.b16 %v524, %v522
    %v601 = vpack.c.b16 %v525, %v523
    %v602 = vpack.c.b16 %v528, %v526
    %v603 = vpack.c.b16 %v529, %v527
    %v604 = vpack.c.b16 %v532, %v530
    %v605 = vpack.c.b16 %v533, %v531
    %v606 = vpack.c.b16 %v536, %v534
    %v607 = vpack.c.b16 %v537, %v535
    %v608 = vpack.c.b16 %v540, %v538
    %v609 = vpack.c.b16 %v541, %v539
    %v610 = vpack.c.b16 %v544, %v542
    %v611 = vpack.c.b16 %v545, %v543
    %v612 = vpack.c.b16 %v548, %v546
    %v613 = vpack.c.b16 %v549, %v547
    %678 = vmatprep.subr.bf16.mxu0 %v565
    %679 = vmatpush1.bf16.msra.mxu0 %v564
    %680 = vmatprep.subr.bf16.mxu0 %v563
    %681 = vmatpush1.bf16.msra.mxu0 %v562
    %682 = vmatprep.subr.bf16.mxu0 %v561
    %683 = vmatpush1.bf16.msra.mxu0 %v560
    %684 = vmatprep.subr.bf16.mxu0 %v559
    %685 = vmatpush1.bf16.msra.mxu0 %v558
    %686 = vmatprep.subr.bf16.mxu0 %v557
    %687 = vmatpush1.bf16.msra.mxu0 %v556
    %688 = vmatprep.subr.bf16.mxu0 %v555
    %689 = vmatpush1.bf16.msra.mxu0 %v554
    %690 = vmatprep.subr.bf16.mxu0 %v553
    %691 = vmatpush1.bf16.msra.mxu0 %v552
    %692 = vmatprep.subr.bf16.mxu0 %v551
    %693 = vmatpush1.bf16.msra.mxu0 %v550
    %694 = vmatprep.subr.bf16.mxu0 %v581
    %695 = vmatpush2.bf16.msra.mxu0 %v580
    %696 = vmatprep.subr.bf16.mxu0 %v579
    %697 = vmatpush2.bf16.msra.mxu0 %v578
    %698 = vmatprep.subr.bf16.mxu0 %v577
    %699 = vmatpush2.bf16.msra.mxu0 %v576
    %700 = vmatprep.subr.bf16.mxu0 %v575
    %701 = vmatpush2.bf16.msra.mxu0 %v574
    %702 = vmatprep.subr.bf16.mxu0 %v573
    %703 = vmatpush2.bf16.msra.mxu0 %v572
    %704 = vmatprep.subr.bf16.mxu0 %v571
    %705 = vmatpush2.bf16.msra.mxu0 %v570
    %706 = vmatprep.subr.bf16.mxu0 %v569
    %707 = vmatpush2.bf16.msra.mxu0 %v568
    %708 = vmatprep.subr.bf16.mxu0 %v567
    %709 = vmatpush2.bf16.msra.mxu0 %v566
    %710 = vmatprep.mubr.bf16.mxu0 %v279
    %711 = vmatmul.mubr.bf16.gmra.mxu0 %v278
    %v712 = vpop.f32.mrf.mxu0
    %v713 = vadd.f32 %v351, %v712
    %v714 = vpop.f32.mrf.mxu0
    %v715 = vadd.f32 %v355, %v714
    %v716 = vpop.f32.mrf.mxu0
    %v717 = vadd.f32 %v351, %v716
    %v718 = vpop.f32.mrf.mxu0
    %v719 = vadd.f32 %v355, %v718
    %720 = vdwg.mxu0
    %721 = vmatprep.subr.bf16.mxu0 %v597
    %722 = vmatpush1.bf16.msra.mxu0 %v596
    %723 = vmatprep.subr.bf16.mxu0 %v595
    %724 = vmatpush1.bf16.msra.mxu0 %v594
    %725 = vmatprep.subr.bf16.mxu0 %v593
    %726 = vmatpush1.bf16.msra.mxu0 %v592
    %727 = vmatprep.subr.bf16.mxu0 %v591
    %728 = vmatpush1.bf16.msra.mxu0 %v590
    %729 = vmatprep.subr.bf16.mxu0 %v589
    %730 = vmatpush1.bf16.msra.mxu0 %v588
    %731 = vmatprep.subr.bf16.mxu0 %v587
    %732 = vmatpush1.bf16.msra.mxu0 %v586
    %733 = vmatprep.subr.bf16.mxu0 %v585
    %734 = vmatpush1.bf16.msra.mxu0 %v584
    %735 = vmatprep.subr.bf16.mxu0 %v583
    %736 = vmatpush1.bf16.msra.mxu0 %v582
    %737 = vmatprep.subr.bf16.mxu0 %v613
    %738 = vmatpush2.bf16.msra.mxu0 %v612
    %739 = vmatprep.subr.bf16.mxu0 %v611
    %740 = vmatpush2.bf16.msra.mxu0 %v610
    %741 = vmatprep.subr.bf16.mxu0 %v609
    %742 = vmatpush2.bf16.msra.mxu0 %v608
    %743 = vmatprep.subr.bf16.mxu0 %v607
    %744 = vmatpush2.bf16.msra.mxu0 %v606
    %745 = vmatprep.subr.bf16.mxu0 %v605
    %746 = vmatpush2.bf16.msra.mxu0 %v604
    %747 = vmatprep.subr.bf16.mxu0 %v603
    %748 = vmatpush2.bf16.msra.mxu0 %v602
    %749 = vmatprep.subr.bf16.mxu0 %v601
    %750 = vmatpush2.bf16.msra.mxu0 %v600
    %751 = vmatprep.subr.bf16.mxu0 %v599
    %752 = vmatpush2.bf16.msra.mxu0 %v598
    %753 = vmatprep.mubr.bf16.mxu0 %v281
    %754 = vmatmul.mubr.bf16.gmra.mxu0 %v280
    %v755 = vpop.f32.mrf.mxu0
    %v756 = vadd.f32 %v713, %v755
    %v757 = vpop.f32.mrf.mxu0
    %v758 = vadd.f32 %v715, %v757
    %v759 = vpop.f32.mrf.mxu0
    %v760 = vadd.f32 %v717, %v759
    %v761 = vpop.f32.mrf.mxu0
    %v762 = vadd.f32 %v719, %v761
    %763 = vdwg.mxu0
    %v764 = vmax.f32 %v756, 0.0
    %v765 = vmax.f32 %v758, 0.0
    %v766 = vmax.f32 %v760, 0.0
    %v767 = vmax.f32 %v762, 0.0
    %v768 = vpack.c.bf16 %v766, %v764
    %v769 = vpack.c.bf16 %v767, %v765
    %v770 = vld [vmem:[#allocation6] sm:$0xf]
    %v771 = vld [vmem:[#allocation6 + $0x4] sm:$0xf]
    %v772 = vld [vmem:[#allocation6 + $0x8] sm:$0xf]
    %v773 = vld [vmem:[#allocation6 + $0xc] sm:$0xf]
    %v774 = vld [vmem:[#allocation6 + $0x10] sm:$0xf]
    %v775 = vld [vmem:[#allocation6 + $0x14] sm:$0xf]
    %v776 = vld [vmem:[#allocation6 + $0x18] sm:$0xf]
    %v777 = vld [vmem:[#allocation6 + $0x1c] sm:$0xf]
    %v778 = vld [vmem:[#allocation6 + $0x20] sm:$0xf]
    %v779 = vld [vmem:[#allocation6 + $0x24] sm:$0xf]
    %v780 = vld [vmem:[#allocation6 + $0x28] sm:$0xf]
    %v781 = vld [vmem:[#allocation6 + $0x2c] sm:$0xf]
    %v782 = vld [vmem:[#allocation6 + $0x30] sm:$0xf]
    %v783 = vld [vmem:[#allocation6 + $0x34] sm:$0xf]
    %v784 = vld [vmem:[#allocation6 + $0x38] sm:$0xf]
    %v785 = vld [vmem:[#allocation6 + $0x3c] sm:$0xf]
    %v786 = vld [vmem:[#allocation6 + $0x40] sm:$0xf]
    %v787 = vld [vmem:[#allocation6 + $0x44] sm:$0xf]
    %v788 = vld [vmem:[#allocation6 + $0x48] sm:$0xf]
    %v789 = vld [vmem:[#allocation6 + $0x4c] sm:$0xf]
    %v790 = vld [vmem:[#allocation6 + $0x50] sm:$0xf]
    %v791 = vld [vmem:[#allocation6 + $0x54] sm:$0xf]
    %v792 = vld [vmem:[#allocation6 + $0x58] sm:$0xf]
    %v793 = vld [vmem:[#allocation6 + $0x5c] sm:$0xf]
    %v794 = vld [vmem:[#allocation6 + $0x60] sm:$0xf]
    %v795 = vld [vmem:[#allocation6 + $0x64] sm:$0xf]
    %v796 = vld [vmem:[#allocation6 + $0x68] sm:$0xf]
    %v797 = vld [vmem:[#allocation6 + $0x6c] sm:$0xf]
    %v798 = vld [vmem:[#allocation6 + $0x70] sm:$0xf]
    %v799 = vld [vmem:[#allocation6 + $0x74] sm:$0xf]
    %v800 = vld [vmem:[#allocation6 + $0x78] sm:$0xf]
    %v801 = vld [vmem:[#allocation6 + $0x7c] sm:$0xf]
    %v802 = vld [vmem:[%s6] sm:$0x1]
    %v804 = vlaneseq
    %v805 = vshrl.u32 %v804, 7
    %v806 = vsub.s32 0, %v805
    %v807 = vrot.slane %v802, %v806
    %v841 = vunpack.c.l.b16 %v770
    %v842 = vunpack.c.l.b16 %v771
    %v843 = vunpack.c.l.b16 %v772
    %v844 = vunpack.c.l.b16 %v773
    %v845 = vunpack.c.l.b16 %v774
    %v846 = vunpack.c.l.b16 %v775
    %v847 = vunpack.c.l.b16 %v776
    %v848 = vunpack.c.l.b16 %v777
    %v849 = vunpack.c.l.b16 %v778
    %v850 = vunpack.c.l.b16 %v779
    %v851 = vunpack.c.l.b16 %v780
    %v852 = vunpack.c.l.b16 %v781
    %v853 = vunpack.c.l.b16 %v782
    %v854 = vunpack.c.l.b16 %v783
    %v855 = vunpack.c.l.b16 %v784
    %v856 = vunpack.c.l.b16 %v785
    %v857 = vunpack.c.l.b16 %v786
    %v858 = vunpack.c.l.b16 %v787
    %v859 = vunpack.c.l.b16 %v788
    %v860 = vunpack.c.l.b16 %v789
    %v861 = vunpack.c.l.b16 %v790
    %v862 = vunpack.c.l.b16 %v791
    %v863 = vunpack.c.l.b16 %v792
    %v864 = vunpack.c.l.b16 %v793
    %v865 = vunpack.c.l.b16 %v794
    %v866 = vunpack.c.l.b16 %v795
    %v867 = vunpack.c.l.b16 %v796
    %v868 = vunpack.c.l.b16 %v797
    %v869 = vunpack.c.l.b16 %v798
    %v870 = vunpack.c.l.b16 %v799
    %v871 = vunpack.c.l.b16 %v800
    %v872 = vunpack.c.l.b16 %v801
    %v873 = vpack.c.b16 %v842, %v841
    %v874 = vpack.c.b16 %v844, %v843
    %v875 = vpack.c.b16 %v846, %v845
    %v876 = vpack.c.b16 %v848, %v847
    %v877 = vpack.c.b16 %v850, %v849
    %v878 = vpack.c.b16 %v852, %v851
    %v879 = vpack.c.b16 %v854, %v853
    %v880 = vpack.c.b16 %v856, %v855
    %v881 = vpack.c.b16 %v858, %v857
    %v882 = vpack.c.b16 %v860, %v859
    %v883 = vpack.c.b16 %v862, %v861
    %v884 = vpack.c.b16 %v864, %v863
    %v885 = vpack.c.b16 %v866, %v865
    %v886 = vpack.c.b16 %v868, %v867
    %v887 = vpack.c.b16 %v870, %v869
    %v888 = vpack.c.b16 %v872, %v871
    %905 = vmatprep.subr.bf16.mxu0 0
    %906 = vmatpush1.bf16.msra.mxu0 %v880
    %907 = vmatprep.subr.bf16.mxu0 0
    %908 = vmatpush1.bf16.msra.mxu0 %v879
    %909 = vmatprep.subr.bf16.mxu0 0
    %910 = vmatpush1.bf16.msra.mxu0 %v878
    %911 = vmatprep.subr.bf16.mxu0 0
    %912 = vmatpush1.bf16.msra.mxu0 %v877
    %913 = vmatprep.subr.bf16.mxu0 0
    %914 = vmatpush1.bf16.msra.mxu0 %v876
    %915 = vmatprep.subr.bf16.mxu0 0
    %916 = vmatpush1.bf16.msra.mxu0 %v875
    %917 = vmatprep.subr.bf16.mxu0 0
    %918 = vmatpush1.bf16.msra.mxu0 %v874
    %919 = vmatprep.subr.bf16.mxu0 0
    %920 = vmatpush1.bf16.msra.mxu0 %v873
    %921 = vmatprep.subr.bf16.mxu0 0
    %922 = vmatpush2.bf16.msra.mxu0 %v888
    %923 = vmatprep.subr.bf16.mxu0 0
    %924 = vmatpush2.bf16.msra.mxu0 %v887
    %925 = vmatprep.subr.bf16.mxu0 0
    %926 = vmatpush2.bf16.msra.mxu0 %v886
    %927 = vmatprep.subr.bf16.mxu0 0
    %928 = vmatpush2.bf16.msra.mxu0 %v885
    %929 = vmatprep.subr.bf16.mxu0 0
    %930 = vmatpush2.bf16.msra.mxu0 %v884
    %931 = vmatprep.subr.bf16.mxu0 0
    %932 = vmatpush2.bf16.msra.mxu0 %v883
    %933 = vmatprep.subr.bf16.mxu0 0
    %934 = vmatpush2.bf16.msra.mxu0 %v882
    %935 = vmatprep.subr.bf16.mxu0 0
    %936 = vmatpush2.bf16.msra.mxu0 %v881
    %937 = vmatprep.mubr.bf16.mxu0 %v769
    %938 = vmatmul.mubr.bf16.gmra.mxu0 %v768
    %v939 = vpop.f32.mrf.mxu0
    %v940 = vadd.f32 %v807, %v939
    %v941 = vpop.f32.mrf.mxu0
    %v942 = vpop.f32.mrf.mxu0
    %v943 = vadd.f32 %v807, %v942
    %v944 = vpop.f32.mrf.mxu0
    %945 = vdwg.mxu0
    %v946 = vmax.f32 %v940, 0.0
    %v947 = vmax.f32 %v943, 0.0
    %v948 = vpack.c.bf16 %v947, %v946
    %v949 = vld [vmem:[#allocation7] sm:$0xf]
    %v950 = vld [vmem:[#allocation7 + $0x4] sm:$0xf]
    %v951 = vld [vmem:[#allocation7 + $0x8] sm:$0xf]
    %v952 = vld [vmem:[#allocation7 + $0xc] sm:$0xf]
    %v953 = vld [vmem:[#allocation7 + $0x10] sm:$0xf]
    %v954 = vld [vmem:[#allocation7 + $0x14] sm:$0xf]
    %v955 = vld [vmem:[#allocation7 + $0x18] sm:$0xf]
    %v956 = vld [vmem:[#allocation7 + $0x1c] sm:$0xf]
    %v957 = vld [vmem:[#allocation7 + $0x20] sm:$0xf]
    %v958 = vld [vmem:[#allocation7 + $0x24] sm:$0xf]
    %v959 = vld [vmem:[#allocation7 + $0x28] sm:$0xf]
    %v960 = vld [vmem:[#allocation7 + $0x2c] sm:$0xf]
    %v961 = vld [vmem:[#allocation7 + $0x30] sm:$0xf]
    %v962 = vld [vmem:[#allocation7 + $0x34] sm:$0xf]
    %v963 = vld [vmem:[#allocation7 + $0x38] sm:$0xf]
    %v964 = vld [vmem:[#allocation7 + $0x3c] sm:$0xf]
    %v965 = vld [vmem:[%s8] sm:$0x1]
    %v967 = vlaneseq
    %v968 = vshrl.u32 %v967, 7
    %v969 = vsub.s32 0, %v968
    %v970 = vrot.slane %v965, %v969
    %v988 = vunpack.c.l.b16 %v949
    %v989 = vunpack.c.l.b16 %v950
    %v990 = vunpack.c.l.b16 %v951
    %v991 = vunpack.c.l.b16 %v952
    %v992 = vunpack.c.l.b16 %v953
    %v993 = vunpack.c.l.b16 %v954
    %v994 = vunpack.c.l.b16 %v955
    %v995 = vunpack.c.l.b16 %v956
    %v996 = vunpack.c.l.b16 %v957
    %v997 = vunpack.c.l.b16 %v958
    %v998 = vunpack.c.l.b16 %v959
    %v999 = vunpack.c.l.b16 %v960
    %v1000 = vunpack.c.l.b16 %v961
    %v1001 = vunpack.c.l.b16 %v962
    %v1002 = vunpack.c.l.b16 %v963
    %v1003 = vunpack.c.l.b16 %v964
    %v1004 = vpack.c.b16 %v989, %v988
    %v1005 = vpack.c.b16 %v991, %v990
    %v1006 = vpack.c.b16 %v993, %v992
    %v1007 = vpack.c.b16 %v995, %v994
    %v1008 = vpack.c.b16 %v997, %v996
    %v1009 = vpack.c.b16 %v999, %v998
    %v1010 = vpack.c.b16 %v1001, %v1000
    %v1011 = vpack.c.b16 %v1003, %v1002
    %1020 = vmatprep.subr.bf16.mxu0 0
    %1021 = vmatpush1.bf16.msra.mxu0 %v1011
    %1022 = vmatprep.subr.bf16.mxu0 0
    %1023 = vmatpush1.bf16.msra.mxu0 %v1010
    %1024 = vmatprep.subr.bf16.mxu0 0
    %1025 = vmatpush1.bf16.msra.mxu0 %v1009
    %1026 = vmatprep.subr.bf16.mxu0 0
    %1027 = vmatpush1.bf16.msra.mxu0 %v1008
    %1028 = vmatprep.subr.bf16.mxu0 0
    %1029 = vmatpush1.bf16.msra.mxu0 %v1007
    %1030 = vmatprep.subr.bf16.mxu0 0
    %1031 = vmatpush1.bf16.msra.mxu0 %v1006
    %1032 = vmatprep.subr.bf16.mxu0 0
    %1033 = vmatpush1.bf16.msra.mxu0 %v1005
    %1034 = vmatprep.subr.bf16.mxu0 0
    %1035 = vmatpush1.bf16.msra.mxu0 %v1004
    %1036 = vmatprep.subr.bf16.mxu0 0
    %1037 = vmatpush2.bf16.msra.mxu0 0
    %1038 = vmatprep.subr.bf16.mxu0 0
    %1039 = vmatpush2.bf16.msra.mxu0 0
    %1040 = vmatprep.subr.bf16.mxu0 0
    %1041 = vmatpush2.bf16.msra.mxu0 0
    %1042 = vmatprep.subr.bf16.mxu0 0
    %1043 = vmatpush2.bf16.msra.mxu0 0
    %1044 = vmatprep.subr.bf16.mxu0 0
    %1045 = vmatpush2.bf16.msra.mxu0 0
    %1046 = vmatprep.subr.bf16.mxu0 0
    %1047 = vmatpush2.bf16.msra.mxu0 0
    %1048 = vmatprep.subr.bf16.mxu0 0
    %1049 = vmatpush2.bf16.msra.mxu0 0
    %1050 = vmatprep.subr.bf16.mxu0 0
    %1051 = vmatpush2.bf16.msra.mxu0 0
    %1052 = vmatprep.mubr.bf16.mxu0 0
    %1053 = vmatmul.mubr.bf16.gmra.mxu0 %v948
    %v1054 = vpop.f32.mrf.mxu0
    %v1055 = vadd.f32 %v970, %v1054
    %v1056 = vpop.f32.mrf.mxu0
    %v1057 = vpop.f32.mrf.mxu0
    %v1058 = vadd.f32 %v970, %v1057
    %v1059 = vpop.f32.mrf.mxu0
    %1060 = vdwg.mxu0
    %v1061 = vmax.f32 %v1055, 0.0
    %v1062 = vmax.f32 %v1058, 0.0
    %v1063 = vpack.c.bf16 %v1062, %v1061
    %v1064 = vld [vmem:[#allocation9] sm:$0xf]
    %v1065 = vld [vmem:[#allocation9 + $0x4] sm:$0xf]
    %v1066 = vld [vmem:[#allocation9 + $0x8] sm:$0xf]
    %v1067 = vld [vmem:[#allocation9 + $0xc] sm:$0xf]
    %v1068 = vld [vmem:[#allocation9 + $0x10] sm:$0xf]
    %v1069 = vld [vmem:[#allocation9 + $0x14] sm:$0xf]
    %v1070 = vld [vmem:[#allocation9 + $0x18] sm:$0xf]
    %v1071 = vld [vmem:[#allocation9 + $0x1c] sm:$0xf]
    %v1072 = vld [vmem:[#allocation9 + $0x20] sm:$0xf]
    %v1073 = vld [vmem:[#allocation9 + $0x24] sm:$0xf]
    %v1074 = vld [vmem:[#allocation9 + $0x28] sm:$0xf]
    %v1075 = vld [vmem:[#allocation9 + $0x2c] sm:$0xf]
    %v1076 = vld [vmem:[#allocation9 + $0x30] sm:$0xf]
    %v1077 = vld [vmem:[#allocation9 + $0x34] sm:$0xf]
    %v1078 = vld [vmem:[#allocation9 + $0x38] sm:$0xf]
    %v1079 = vld [vmem:[#allocation9 + $0x3c] sm:$0xf]
    %v1080 = vld [vmem:[%s10] sm:$0x1]
    %v1082 = vlaneseq
    %v1083 = vshrl.u32 %v1082, 7
    %v1084 = vsub.s32 0, %v1083
    %v1085 = vrot.slane %v1080, %v1084
    %v1103 = vunpack.c.l.b16 %v1064
    %v1104 = vunpack.c.l.b16 %v1065
    %v1105 = vunpack.c.l.b16 %v1066
    %v1106 = vunpack.c.l.b16 %v1067
    %v1107 = vunpack.c.l.b16 %v1068
    %v1108 = vunpack.c.l.b16 %v1069
    %v1109 = vunpack.c.l.b16 %v1070
    %v1110 = vunpack.c.l.b16 %v1071
    %v1111 = vunpack.c.l.b16 %v1072
    %v1112 = vunpack.c.l.b16 %v1073
    %v1113 = vunpack.c.l.b16 %v1074
    %v1114 = vunpack.c.l.b16 %v1075
    %v1115 = vunpack.c.l.b16 %v1076
    %v1116 = vunpack.c.l.b16 %v1077
    %v1117 = vunpack.c.l.b16 %v1078
    %v1118 = vunpack.c.l.b16 %v1079
    %v1119 = vpack.c.b16 %v1104, %v1103
    %v1120 = vpack.c.b16 %v1106, %v1105
    %v1121 = vpack.c.b16 %v1108, %v1107
    %v1122 = vpack.c.b16 %v1110, %v1109
    %v1123 = vpack.c.b16 %v1112, %v1111
    %v1124 = vpack.c.b16 %v1114, %v1113
    %v1125 = vpack.c.b16 %v1116, %v1115
    %v1126 = vpack.c.b16 %v1118, %v1117
    %1135 = vmatprep.subr.bf16.mxu0 0
    %1136 = vmatpush1.bf16.msra.mxu0 %v1126
    %1137 = vmatprep.subr.bf16.mxu0 0
    %1138 = vmatpush1.bf16.msra.mxu0 %v1125
    %1139 = vmatprep.subr.bf16.mxu0 0
    %1140 = vmatpush1.bf16.msra.mxu0 %v1124
    %1141 = vmatprep.subr.bf16.mxu0 0
    %1142 = vmatpush1.bf16.msra.mxu0 %v1123
    %1143 = vmatprep.subr.bf16.mxu0 0
    %1144 = vmatpush1.bf16.msra.mxu0 %v1122
    %1145 = vmatprep.subr.bf16.mxu0 0
    %1146 = vmatpush1.bf16.msra.mxu0 %v1121
    %1147 = vmatprep.subr.bf16.mxu0 0
    %1148 = vmatpush1.bf16.msra.mxu0 %v1120
    %1149 = vmatprep.subr.bf16.mxu0 0
    %1150 = vmatpush1.bf16.msra.mxu0 %v1119
    %1151 = vmatprep.subr.bf16.mxu0 0
    %1152 = vmatpush2.bf16.msra.mxu0 0
    %1153 = vmatprep.subr.bf16.mxu0 0
    %1154 = vmatpush2.bf16.msra.mxu0 0
    %1155 = vmatprep.subr.bf16.mxu0 0
    %1156 = vmatpush2.bf16.msra.mxu0 0
    %1157 = vmatprep.subr.bf16.mxu0 0
    %1158 = vmatpush2.bf16.msra.mxu0 0
    %1159 = vmatprep.subr.bf16.mxu0 0
    %1160 = vmatpush2.bf16.msra.mxu0 0
    %1161 = vmatprep.subr.bf16.mxu0 0
    %1162 = vmatpush2.bf16.msra.mxu0 0
    %1163 = vmatprep.subr.bf16.mxu0 0
    %1164 = vmatpush2.bf16.msra.mxu0 0
    %1165 = vmatprep.subr.bf16.mxu0 0
    %1166 = vmatpush2.bf16.msra.mxu0 0
    %1167 = vmatprep.mubr.bf16.mxu0 0
    %1168 = vmatmul.mubr.bf16.gmra.mxu0 %v1063
    %v1169 = vpop.f32.mrf.mxu0
    %v1170 = vadd.f32 %v1085, %v1169
    %v1171 = vpop.f32.mrf.mxu0
    %v1172 = vpop.f32.mrf.mxu0
    %v1173 = vadd.f32 %v1085, %v1172
    %v1174 = vpop.f32.mrf.mxu0
    %1175 = vdwg.mxu0
    %v1176 = vtanh.pop %v1170
    %v1177 = vtanh.pop %v1173
    %v1178 = vpack.c.bf16 %v1177, %v1176
    %v1180 = vunpack.c.l.b16 %v1178
    %v1181 = vunpack.c.h.b16 %v1178
    %v1182 = vpack.c.b16 %v1180, %v1180
    %v1183 = vpack.c.b16 %v1181, %v1181
    %1186 = vst [vmem:[%s11] sm:$0xf] %v1182
    %1187 = vst [vmem:[%s11 + $0x4] sm:$0xf] %v1183
    // Predicated region
    $region66: #{forward.1} parent=1 // pred_check
      _
    $region67: #{forward.1} parent=1 // pred_check_branch
      %1189 = sbr.rel (0) target = $region69
    $region68: #{forward.1} parent=1 // pred_region
      _
    $region69: #{forward.1} parent=1 // pred_fallthru
      _
    // Predicated region
    $region70: #{forward.1} parent=1 // pred_check
      _
    $region71: #{forward.1} parent=1 // pred_check_branch
      %1191 = sbr.rel (0) target = $region73
    $region72: #{forward.1} parent=1 // pred_region
      _
    $region73: #{forward.1} parent=1 // pred_fallthru
      _
    %1192 = vsyncpa [#allocation3], 1
    %1193 = vsyncpa [#allocation5], 1
    %1194 = vsyncpa [#allocation8], 1

</llo_original>
